<compile_context>
chip_gen: v7x
topology: tpu7x:2x2x1
jax: 0.10.0
libtpu: 0.0.40
codegen_flags: <defaults>
</compile_context>

<pallas_src>
import jax
import jax.numpy as jnp
from jax.experimental import pallas as pl
from jax.experimental.pallas import tpu as pltpu

FILTER_LENGTH = 256
HOP = 128
PAD_RIGHT = 64
CUTOFF = FILTER_LENGTH // 2 + 1                         # 129
NUM_FRAMES = 6                                          # module slices [:, :, :6]
PADDED_LEN = NUM_FRAMES * HOP + (FILTER_LENGTH - HOP)   # 896 samples feed 6 frames
SEQ_LEN = PADDED_LEN - PAD_RIGHT                        # 832: min L giving 6 frames
NPACK = 2 * (CUTOFF - 1)                                # 256 packed output columns


def _round_up(v, m):
    return -(-v // m) * m


def _stft_kernel(x_ref, rhs_ref, nyq_ref, out_ref):
    # x_ref:   (TB, 896)      padded signal block (f32)
    # rhs_ref: (256, 256)     bf16 packed basis: cols [0:128]=real bins 0..127,
    #                         cols [128:256]=imag bins 0..127 (taps on rows)
    # nyq_ref: (2, 256)       f32 Nyquist-bin basis rows (real, imag)
    # out_ref: (6, TB, 256)   magnitude; col f<128 -> bin f, col 128 -> bin 128
    tb = x_ref.shape[0]
    rhs = rhs_ref[...]                                    # hoisted, grid-invariant
    nyq_r = nyq_ref[0:1, :]                               # (1, 256)
    nyq_i = nyq_ref[1:2, :]                               # (1, 256)
    lane = jax.lax.broadcasted_iota(jnp.int32, (tb, HOP), 1)

    for t in range(NUM_FRAMES):
        # Frame t = x[:, t*128 : t*128+256]: lane-aligned static slice, fed to
        # the MXU directly (no im2col copy).
        fr = x_ref[:, t * HOP: t * HOP + FILTER_LENGTH]   # (TB, 256) f32
        res = jnp.dot(fr.astype(jnp.bfloat16), rhs,
                      preferred_element_type=jnp.float32)  # (TB, 256) f32
        re = res[:, :HOP]
        im = res[:, HOP:]
        mag = jnp.sqrt(re * re + im * im)                 # (TB, 128) bins 0..127

        # Nyquist bin (k=128): f32 VPU multiply + cross-lane reduce (free slots).
        rn = jnp.sum(fr * nyq_r, axis=-1, keepdims=True)  # (TB, 1)
        inn = jnp.sum(fr * nyq_i, axis=-1, keepdims=True) # (TB, 1)
        magn = jnp.sqrt(rn * rn + inn * inn)              # (TB, 1)

        # Lane-dense, unmasked stores (128-wide each).
        out_ref[t, :, 0:HOP] = mag
        out_ref[t, :, HOP:NPACK] = jnp.where(lane == 0, magn, 0.0)


def stft_forward(x, forward_basis_buffer, block_batch=256):
    """x: (B, L>=832) f32; forward_basis_buffer: (258, 1, 256) f32 -> (B, 129, 6)."""
    B, L = x.shape
    assert L >= SEQ_LEN, "need at least 832 samples for 6 STFT frames"
    x = x.astype(jnp.float32)

    # ReflectionPad1d((0, 64)); only the first 896 padded samples feed frames 0..5,
    # so skip the pad entirely when L >= 896 and otherwise build only the 64
    # reflected samples (no full-signal extra HBM pass).
    if L >= PADDED_LEN:
        padded = x[:, :PADDED_LEN]
    else:
        tail = jnp.flip(x[:, L - 1 - PAD_RIGHT: L - 1], axis=1)   # x[L-2] .. x[L-65]
        padded = jnp.concatenate([x, tail], axis=1)[:, :PADDED_LEN]

    # Batch tiling: TB multiple of 8, capped at block_batch, and chosen so there
    # are >= 2 grid steps when the batch allows it (v7x dual-TC sharding).
    bp = _round_up(B, 8)
    half = _round_up(-(-bp // 2), 8)
    tb = max(8, min(block_batch, half))
    bp = _round_up(bp, tb)
    if bp != B:
        padded = jnp.pad(padded, ((0, bp - B), (0, 0)))   # zero rows, discarded later

    # Basis prep: fused + packed RHS (taps x [real 0..127 | imag 0..127]) in bf16,
    # plus the two Nyquist rows kept in f32 for the VPU path.
    basis = forward_basis_buffer[:, 0, :].astype(jnp.float32)     # (258, 256)
    br = basis[:CUTOFF]                                           # (129, 256) real
    bi = basis[CUTOFF:]                                           # (129, 256) imag
    rhs = jnp.concatenate([br[:HOP].T, bi[:HOP].T], axis=1).astype(jnp.bfloat16)  # (256, 256)
    nyq = jnp.stack([br[HOP], bi[HOP]], axis=0)                   # (2, 256) f32

    grid = (bp // tb,)
    flops = 2 * NUM_FRAMES * bp * FILTER_LENGTH * NPACK \
        + 4 * NUM_FRAMES * bp * FILTER_LENGTH
    bytes_accessed = (bp * PADDED_LEN * 4
                      + FILTER_LENGTH * NPACK * 2
                      + 2 * FILTER_LENGTH * 4
                      + NUM_FRAMES * bp * NPACK * 4)

    out = pl.pallas_call(
        _stft_kernel,
        out_shape=jax.ShapeDtypeStruct((NUM_FRAMES, bp, NPACK), jnp.float32),
        grid_spec=pltpu.PrefetchScalarGridSpec(
            num_scalar_prefetch=0,
            grid=grid,
            in_specs=[
                pl.BlockSpec((tb, PADDED_LEN), lambda i: (i, 0)),
                pl.BlockSpec((FILTER_LENGTH, NPACK), lambda i: (0, 0)),
                pl.BlockSpec((2, FILTER_LENGTH), lambda i: (0, 0)),
            ],
            out_specs=pl.BlockSpec((NUM_FRAMES, tb, NPACK), lambda i: (0, i, 0)),
        ),
        compiler_params=pltpu.CompilerParams(
            dimension_semantics=("parallel",),
            vmem_limit_bytes=32 * 1024 * 1024),
        cost_estimate=pl.CostEstimate(
            flops=int(flops),
            transcendentals=int(NUM_FRAMES * bp * CUTOFF),
            bytes_accessed=int(bytes_accessed)),
    )(padded, rhs, nyq)                                   # (6, bp, 256)

    # Layout plumbing back to PyTorch's (B, 129, 6).
    return jnp.transpose(out[:, :B, :CUTOFF], (1, 2, 0))


def stft_reference(x, forward_basis_buffer):
    """Pure-JAX reference mirroring the PyTorch forward exactly (f32 conv)."""
    padded = jnp.pad(x, ((0, 0), (0, PAD_RIGHT)), mode="reflect")[:, None, :]
    out = jax.lax.conv_general_dilated(
        padded, forward_basis_buffer,
        window_strides=(HOP,), padding="VALID",
        dimension_numbers=("NCH", "OIH", "NCH"),
        precision=jax.lax.Precision.HIGHEST)
    real = out[:, :CUTOFF, :NUM_FRAMES]
    imag = out[:, CUTOFF:, :NUM_FRAMES]
    return jnp.sqrt(real ** 2 + imag ** 2)


if __name__ == "__main__":
    key = jax.random.PRNGKey(0)
    k_basis, k_x = jax.random.split(key)

    # The PyTorch module registers a zero buffer of shape (258, 1, 256); we
    # fill it deterministically with random values so the output is non-trivial.
    forward_basis_buffer = jax.random.normal(
        k_basis, (2 * CUTOFF, 1, FILTER_LENGTH), dtype=jnp.float32)

    batch = 2
    x = jax.random.normal(k_x, (batch, SEQ_LEN), dtype=jnp.float32)

    out = jax.block_until_ready(stft_forward(x, forward_basis_buffer))
    ref = jax.block_until_ready(stft_reference(x, forward_basis_buffer))

    assert out.shape == (batch, CUTOFF, NUM_FRAMES), out.shape
    assert out.dtype == jnp.float32
    # bf16 MXU operands (f32 accumulation) -> normalized max-error tolerance 1e-2.
    err = float(jnp.max(jnp.abs(out - ref)) / jnp.max(jnp.abs(ref)))
    assert err < 1e-2, err

    print("KERNEL_OK")
</pallas_src>

<mosaic_0001>
module attributes {stable_mosaic.version = 11 : i64} {
  func.func @_stft_kernel(%arg0: i32, %arg1: memref<8x896xf32, #tpu.memory_space<vmem>>, %arg2: memref<256x256xbf16, #tpu.memory_space<vmem>>, %arg3: memref<2x256xf32, #tpu.memory_space<vmem>>, %arg4: memref<6x8x256xf32, #tpu.memory_space<vmem>>) attributes {dimension_semantics = [#tpu.dimension_semantics<parallel>], iteration_bounds = array<i64: 1>, scalar_prefetch = 0 : i64, scratch_operands = 0 : i64, tpu.core_type = #tpu.core_type<tc>, window_params = [{transform_indices = @transform_0, window_bounds = array<i64: 8, 896>}, {pipeline_mode = #tpu.pipeline_mode<synchronous>, transform_indices = @transform_1, window_bounds = array<i64: 256, 256>}, {pipeline_mode = #tpu.pipeline_mode<synchronous>, transform_indices = @transform_2, window_bounds = array<i64: 2, 256>}, {transform_indices = @transform_3, window_bounds = array<i64: 6, 8, 256>}]} {
    %c0 = arith.constant 0 : index
    %c0_0 = arith.constant 0 : index
    %0 = vector.load %arg2[%c0, %c0_0] : memref<256x256xbf16, #tpu.memory_space<vmem>>, vector<256x256xbf16>
    %c0_1 = arith.constant 0 : index
    %c0_2 = arith.constant 0 : index
    %1 = vector.load %arg3[%c0_1, %c0_2] : memref<2x256xf32, #tpu.memory_space<vmem>>, vector<1x256xf32>
    %c1 = arith.constant 1 : index
    %c0_3 = arith.constant 0 : index
    %2 = vector.load %arg3[%c1, %c0_3] : memref<2x256xf32, #tpu.memory_space<vmem>>, vector<1x256xf32>
    %3 = tpu.iota {dimensions = array<i32: 1>} : vector<8x128xi32>
    %c0_4 = arith.constant 0 : index
    %c0_5 = arith.constant 0 : index
    %4 = vector.load %arg1[%c0_4, %c0_5] : memref<8x896xf32, #tpu.memory_space<vmem>>, vector<8x256xf32>
    %5 = arith.truncf %4 : vector<8x256xf32> to vector<8x256xbf16>
    %cst = arith.constant dense<0.000000e+00> : vector<8x256xf32>
    %6 = tpu.matmul %5, %0, %cst {dimension_numbers = #tpu.dot_dimension_numbers<[1], [0], [0], [1], [0, 0, 1, 1], [], []>} : vector<8x256xbf16>, vector<256x256xbf16>, vector<8x256xf32> -> vector<8x256xf32>
    %7 = vector.extract_strided_slice %6 {offsets = [0, 0], sizes = [8, 128], strides = [1, 1]} : vector<8x256xf32> to vector<8x128xf32>
    %8 = vector.extract_strided_slice %6 {offsets = [0, 128], sizes = [8, 128], strides = [1, 1]} : vector<8x256xf32> to vector<8x128xf32>
    %9 = arith.mulf %7, %7 : vector<8x128xf32>
    %10 = arith.mulf %8, %8 : vector<8x128xf32>
    %11 = arith.addf %9, %10 : vector<8x128xf32>
    %12 = math.sqrt %11 : vector<8x128xf32>
    %13 = vector.broadcast %1 : vector<1x256xf32> to vector<8x256xf32>
    %14 = arith.mulf %4, %13 : vector<8x256xf32>
    %cst_6 = arith.constant dense<0.000000e+00> : vector<8xf32>
    %15 = vector.multi_reduction <add>, %14, %cst_6 [1] : vector<8x256xf32> to vector<8xf32>
    %16 = vector.shape_cast %15 : vector<8xf32> to vector<8x1xf32>
    %17 = vector.broadcast %2 : vector<1x256xf32> to vector<8x256xf32>
    %18 = arith.mulf %4, %17 : vector<8x256xf32>
    %cst_7 = arith.constant dense<0.000000e+00> : vector<8xf32>
    %19 = vector.multi_reduction <add>, %18, %cst_7 [1] : vector<8x256xf32> to vector<8xf32>
    %20 = vector.shape_cast %19 : vector<8xf32> to vector<8x1xf32>
    %21 = arith.mulf %16, %16 : vector<8x1xf32>
    %22 = arith.mulf %20, %20 : vector<8x1xf32>
    %23 = arith.addf %21, %22 : vector<8x1xf32>
    %24 = math.sqrt %23 : vector<8x1xf32>
    %c0_8 = arith.constant 0 : index
    %c0_9 = arith.constant 0 : index
    %c0_10 = arith.constant 0 : index
    %25 = vector.load %arg4[%c0_8, %c0_9, %c0_10] : memref<6x8x256xf32, #tpu.memory_space<vmem>>, vector<1x8x128xf32>
    %26 = vector.shape_cast %25 : vector<1x8x128xf32> to vector<8x128xf32>
    %27 = vector.shape_cast %12 : vector<8x128xf32> to vector<1x8x128xf32>
    tpu.vector_store %arg4[%c0_8, %c0_9, %c0_10], %27 {strides = array<i32>} : memref<6x8x256xf32, #tpu.memory_space<vmem>>, vector<1x8x128xf32>,
    %c0_i32 = arith.constant 0 : i32
    %28 = vector.broadcast %c0_i32 : i32 to vector<8x128xi32>
    %29 = arith.cmpi eq, %3, %28 : vector<8x128xi32>
    %cst_11 = arith.constant 0.000000e+00 : f32
    %30 = vector.shape_cast %24 : vector<8x1xf32> to vector<8x1xf32>
    %31 = vector.broadcast %30 : vector<8x1xf32> to vector<8x128xf32>
    %32 = vector.broadcast %cst_11 : f32 to vector<8x128xf32>
    %33 = arith.select %29, %31, %32 : vector<8x128xi1>, vector<8x128xf32>
    %c0_12 = arith.constant 0 : index
    %c0_13 = arith.constant 0 : index
    %c128 = arith.constant 128 : index
    %34 = vector.load %arg4[%c0_12, %c0_13, %c128] : memref<6x8x256xf32, #tpu.memory_space<vmem>>, vector<1x8x128xf32>
    %35 = vector.shape_cast %34 : vector<1x8x128xf32> to vector<8x128xf32>
    %36 = vector.shape_cast %33 : vector<8x128xf32> to vector<1x8x128xf32>
    tpu.vector_store %arg4[%c0_12, %c0_13, %c128], %36 {strides = array<i32>} : memref<6x8x256xf32, #tpu.memory_space<vmem>>, vector<1x8x128xf32>,
    %c0_14 = arith.constant 0 : index
    %c128_15 = arith.constant 128 : index
    %37 = vector.load %arg1[%c0_14, %c128_15] : memref<8x896xf32, #tpu.memory_space<vmem>>, vector<8x256xf32>
    %38 = arith.truncf %37 : vector<8x256xf32> to vector<8x256xbf16>
    %cst_16 = arith.constant dense<0.000000e+00> : vector<8x256xf32>
    %39 = tpu.matmul %38, %0, %cst_16 {dimension_numbers = #tpu.dot_dimension_numbers<[1], [0], [0], [1], [0, 0, 1, 1], [], []>} : vector<8x256xbf16>, vector<256x256xbf16>, vector<8x256xf32> -> vector<8x256xf32>
    %40 = vector.extract_strided_slice %39 {offsets = [0, 0], sizes = [8, 128], strides = [1, 1]} : vector<8x256xf32> to vector<8x128xf32>
    %41 = vector.extract_strided_slice %39 {offsets = [0, 128], sizes = [8, 128], strides = [1, 1]} : vector<8x256xf32> to vector<8x128xf32>
    %42 = arith.mulf %40, %40 : vector<8x128xf32>
    %43 = arith.mulf %41, %41 : vector<8x128xf32>
    %44 = arith.addf %42, %43 : vector<8x128xf32>
    %45 = math.sqrt %44 : vector<8x128xf32>
    %46 = vector.broadcast %1 : vector<1x256xf32> to vector<8x256xf32>
    %47 = arith.mulf %37, %46 : vector<8x256xf32>
    %cst_17 = arith.constant dense<0.000000e+00> : vector<8xf32>
    %48 = vector.multi_reduction <add>, %47, %cst_17 [1] : vector<8x256xf32> to vector<8xf32>
    %49 = vector.shape_cast %48 : vector<8xf32> to vector<8x1xf32>
    %50 = vector.broadcast %2 : vector<1x256xf32> to vector<8x256xf32>
    %51 = arith.mulf %37, %50 : vector<8x256xf32>
    %cst_18 = arith.constant dense<0.000000e+00> : vector<8xf32>
    %52 = vector.multi_reduction <add>, %51, %cst_18 [1] : vector<8x256xf32> to vector<8xf32>
    %53 = vector.shape_cast %52 : vector<8xf32> to vector<8x1xf32>
    %54 = arith.mulf %49, %49 : vector<8x1xf32>
    %55 = arith.mulf %53, %53 : vector<8x1xf32>
    %56 = arith.addf %54, %55 : vector<8x1xf32>
    %57 = math.sqrt %56 : vector<8x1xf32>
    %c1_19 = arith.constant 1 : index
    %c0_20 = arith.constant 0 : index
    %c0_21 = arith.constant 0 : index
    %58 = vector.load %arg4[%c1_19, %c0_20, %c0_21] : memref<6x8x256xf32, #tpu.memory_space<vmem>>, vector<1x8x128xf32>
    %59 = vector.shape_cast %58 : vector<1x8x128xf32> to vector<8x128xf32>
    %60 = vector.shape_cast %45 : vector<8x128xf32> to vector<1x8x128xf32>
    tpu.vector_store %arg4[%c1_19, %c0_20, %c0_21], %60 {strides = array<i32>} : memref<6x8x256xf32, #tpu.memory_space<vmem>>, vector<1x8x128xf32>,
    %c0_i32_22 = arith.constant 0 : i32
    %61 = vector.broadcast %c0_i32_22 : i32 to vector<8x128xi32>
    %62 = arith.cmpi eq, %3, %61 : vector<8x128xi32>
    %cst_23 = arith.constant 0.000000e+00 : f32
    %63 = vector.shape_cast %57 : vector<8x1xf32> to vector<8x1xf32>
    %64 = vector.broadcast %63 : vector<8x1xf32> to vector<8x128xf32>
    %65 = vector.broadcast %cst_23 : f32 to vector<8x128xf32>
    %66 = arith.select %62, %64, %65 : vector<8x128xi1>, vector<8x128xf32>
    %c1_24 = arith.constant 1 : index
    %c0_25 = arith.constant 0 : index
    %c128_26 = arith.constant 128 : index
    %67 = vector.load %arg4[%c1_24, %c0_25, %c128_26] : memref<6x8x256xf32, #tpu.memory_space<vmem>>, vector<1x8x128xf32>
    %68 = vector.shape_cast %67 : vector<1x8x128xf32> to vector<8x128xf32>
    %69 = vector.shape_cast %66 : vector<8x128xf32> to vector<1x8x128xf32>
    tpu.vector_store %arg4[%c1_24, %c0_25, %c128_26], %69 {strides = array<i32>} : memref<6x8x256xf32, #tpu.memory_space<vmem>>, vector<1x8x128xf32>,
    %c0_27 = arith.constant 0 : index
    %c256 = arith.constant 256 : index
    %70 = vector.load %arg1[%c0_27, %c256] : memref<8x896xf32, #tpu.memory_space<vmem>>, vector<8x256xf32>
    %71 = arith.truncf %70 : vector<8x256xf32> to vector<8x256xbf16>
    %cst_28 = arith.constant dense<0.000000e+00> : vector<8x256xf32>
    %72 = tpu.matmul %71, %0, %cst_28 {dimension_numbers = #tpu.dot_dimension_numbers<[1], [0], [0], [1], [0, 0, 1, 1], [], []>} : vector<8x256xbf16>, vector<256x256xbf16>, vector<8x256xf32> -> vector<8x256xf32>
    %73 = vector.extract_strided_slice %72 {offsets = [0, 0], sizes = [8, 128], strides = [1, 1]} : vector<8x256xf32> to vector<8x128xf32>
    %74 = vector.extract_strided_slice %72 {offsets = [0, 128], sizes = [8, 128], strides = [1, 1]} : vector<8x256xf32> to vector<8x128xf32>
    %75 = arith.mulf %73, %73 : vector<8x128xf32>
    %76 = arith.mulf %74, %74 : vector<8x128xf32>
    %77 = arith.addf %75, %76 : vector<8x128xf32>
    %78 = math.sqrt %77 : vector<8x128xf32>
    %79 = vector.broadcast %1 : vector<1x256xf32> to vector<8x256xf32>
    %80 = arith.mulf %70, %79 : vector<8x256xf32>
    %cst_29 = arith.constant dense<0.000000e+00> : vector<8xf32>
    %81 = vector.multi_reduction <add>, %80, %cst_29 [1] : vector<8x256xf32> to vector<8xf32>
    %82 = vector.shape_cast %81 : vector<8xf32> to vector<8x1xf32>
    %83 = vector.broadcast %2 : vector<1x256xf32> to vector<8x256xf32>
    %84 = arith.mulf %70, %83 : vector<8x256xf32>
    %cst_30 = arith.constant dense<0.000000e+00> : vector<8xf32>
    %85 = vector.multi_reduction <add>, %84, %cst_30 [1] : vector<8x256xf32> to vector<8xf32>
    %86 = vector.shape_cast %85 : vector<8xf32> to vector<8x1xf32>
    %87 = arith.mulf %82, %82 : vector<8x1xf32>
    %88 = arith.mulf %86, %86 : vector<8x1xf32>
    %89 = arith.addf %87, %88 : vector<8x1xf32>
    %90 = math.sqrt %89 : vector<8x1xf32>
    %c2 = arith.constant 2 : index
    %c0_31 = arith.constant 0 : index
    %c0_32 = arith.constant 0 : index
    %91 = vector.load %arg4[%c2, %c0_31, %c0_32] : memref<6x8x256xf32, #tpu.memory_space<vmem>>, vector<1x8x128xf32>
    %92 = vector.shape_cast %91 : vector<1x8x128xf32> to vector<8x128xf32>
    %93 = vector.shape_cast %78 : vector<8x128xf32> to vector<1x8x128xf32>
    tpu.vector_store %arg4[%c2, %c0_31, %c0_32], %93 {strides = array<i32>} : memref<6x8x256xf32, #tpu.memory_space<vmem>>, vector<1x8x128xf32>,
    %c0_i32_33 = arith.constant 0 : i32
    %94 = vector.broadcast %c0_i32_33 : i32 to vector<8x128xi32>
    %95 = arith.cmpi eq, %3, %94 : vector<8x128xi32>
    %cst_34 = arith.constant 0.000000e+00 : f32
    %96 = vector.shape_cast %90 : vector<8x1xf32> to vector<8x1xf32>
    %97 = vector.broadcast %96 : vector<8x1xf32> to vector<8x128xf32>
    %98 = vector.broadcast %cst_34 : f32 to vector<8x128xf32>
    %99 = arith.select %95, %97, %98 : vector<8x128xi1>, vector<8x128xf32>
    %c2_35 = arith.constant 2 : index
    %c0_36 = arith.constant 0 : index
    %c128_37 = arith.constant 128 : index
    %100 = vector.load %arg4[%c2_35, %c0_36, %c128_37] : memref<6x8x256xf32, #tpu.memory_space<vmem>>, vector<1x8x128xf32>
    %101 = vector.shape_cast %100 : vector<1x8x128xf32> to vector<8x128xf32>
    %102 = vector.shape_cast %99 : vector<8x128xf32> to vector<1x8x128xf32>
    tpu.vector_store %arg4[%c2_35, %c0_36, %c128_37], %102 {strides = array<i32>} : memref<6x8x256xf32, #tpu.memory_space<vmem>>, vector<1x8x128xf32>,
    %c0_38 = arith.constant 0 : index
    %c384 = arith.constant 384 : index
    %103 = vector.load %arg1[%c0_38, %c384] : memref<8x896xf32, #tpu.memory_space<vmem>>, vector<8x256xf32>
    %104 = arith.truncf %103 : vector<8x256xf32> to vector<8x256xbf16>
    %cst_39 = arith.constant dense<0.000000e+00> : vector<8x256xf32>
    %105 = tpu.matmul %104, %0, %cst_39 {dimension_numbers = #tpu.dot_dimension_numbers<[1], [0], [0], [1], [0, 0, 1, 1], [], []>} : vector<8x256xbf16>, vector<256x256xbf16>, vector<8x256xf32> -> vector<8x256xf32>
    %106 = vector.extract_strided_slice %105 {offsets = [0, 0], sizes = [8, 128], strides = [1, 1]} : vector<8x256xf32> to vector<8x128xf32>
    %107 = vector.extract_strided_slice %105 {offsets = [0, 128], sizes = [8, 128], strides = [1, 1]} : vector<8x256xf32> to vector<8x128xf32>
    %108 = arith.mulf %106, %106 : vector<8x128xf32>
    %109 = arith.mulf %107, %107 : vector<8x128xf32>
    %110 = arith.addf %108, %109 : vector<8x128xf32>
    %111 = math.sqrt %110 : vector<8x128xf32>
    %112 = vector.broadcast %1 : vector<1x256xf32> to vector<8x256xf32>
    %113 = arith.mulf %103, %112 : vector<8x256xf32>
    %cst_40 = arith.constant dense<0.000000e+00> : vector<8xf32>
    %114 = vector.multi_reduction <add>, %113, %cst_40 [1] : vector<8x256xf32> to vector<8xf32>
    %115 = vector.shape_cast %114 : vector<8xf32> to vector<8x1xf32>
    %116 = vector.broadcast %2 : vector<1x256xf32> to vector<8x256xf32>
    %117 = arith.mulf %103, %116 : vector<8x256xf32>
    %cst_41 = arith.constant dense<0.000000e+00> : vector<8xf32>
    %118 = vector.multi_reduction <add>, %117, %cst_41 [1] : vector<8x256xf32> to vector<8xf32>
    %119 = vector.shape_cast %118 : vector<8xf32> to vector<8x1xf32>
    %120 = arith.mulf %115, %115 : vector<8x1xf32>
    %121 = arith.mulf %119, %119 : vector<8x1xf32>
    %122 = arith.addf %120, %121 : vector<8x1xf32>
    %123 = math.sqrt %122 : vector<8x1xf32>
    %c3 = arith.constant 3 : index
    %c0_42 = arith.constant 0 : index
    %c0_43 = arith.constant 0 : index
    %124 = vector.load %arg4[%c3, %c0_42, %c0_43] : memref<6x8x256xf32, #tpu.memory_space<vmem>>, vector<1x8x128xf32>
    %125 = vector.shape_cast %124 : vector<1x8x128xf32> to vector<8x128xf32>
    %126 = vector.shape_cast %111 : vector<8x128xf32> to vector<1x8x128xf32>
    tpu.vector_store %arg4[%c3, %c0_42, %c0_43], %126 {strides = array<i32>} : memref<6x8x256xf32, #tpu.memory_space<vmem>>, vector<1x8x128xf32>,
    %c0_i32_44 = arith.constant 0 : i32
    %127 = vector.broadcast %c0_i32_44 : i32 to vector<8x128xi32>
    %128 = arith.cmpi eq, %3, %127 : vector<8x128xi32>
    %cst_45 = arith.constant 0.000000e+00 : f32
    %129 = vector.shape_cast %123 : vector<8x1xf32> to vector<8x1xf32>
    %130 = vector.broadcast %129 : vector<8x1xf32> to vector<8x128xf32>
    %131 = vector.broadcast %cst_45 : f32 to vector<8x128xf32>
    %132 = arith.select %128, %130, %131 : vector<8x128xi1>, vector<8x128xf32>
    %c3_46 = arith.constant 3 : index
    %c0_47 = arith.constant 0 : index
    %c128_48 = arith.constant 128 : index
    %133 = vector.load %arg4[%c3_46, %c0_47, %c128_48] : memref<6x8x256xf32, #tpu.memory_space<vmem>>, vector<1x8x128xf32>
    %134 = vector.shape_cast %133 : vector<1x8x128xf32> to vector<8x128xf32>
    %135 = vector.shape_cast %132 : vector<8x128xf32> to vector<1x8x128xf32>
    tpu.vector_store %arg4[%c3_46, %c0_47, %c128_48], %135 {strides = array<i32>} : memref<6x8x256xf32, #tpu.memory_space<vmem>>, vector<1x8x128xf32>,
    %c0_49 = arith.constant 0 : index
    %c512 = arith.constant 512 : index
    %136 = vector.load %arg1[%c0_49, %c512] : memref<8x896xf32, #tpu.memory_space<vmem>>, vector<8x256xf32>
    %137 = arith.truncf %136 : vector<8x256xf32> to vector<8x256xbf16>
    %cst_50 = arith.constant dense<0.000000e+00> : vector<8x256xf32>
    %138 = tpu.matmul %137, %0, %cst_50 {dimension_numbers = #tpu.dot_dimension_numbers<[1], [0], [0], [1], [0, 0, 1, 1], [], []>} : vector<8x256xbf16>, vector<256x256xbf16>, vector<8x256xf32> -> vector<8x256xf32>
    %139 = vector.extract_strided_slice %138 {offsets = [0, 0], sizes = [8, 128], strides = [1, 1]} : vector<8x256xf32> to vector<8x128xf32>
    %140 = vector.extract_strided_slice %138 {offsets = [0, 128], sizes = [8, 128], strides = [1, 1]} : vector<8x256xf32> to vector<8x128xf32>
    %141 = arith.mulf %139, %139 : vector<8x128xf32>
    %142 = arith.mulf %140, %140 : vector<8x128xf32>
    %143 = arith.addf %141, %142 : vector<8x128xf32>
    %144 = math.sqrt %143 : vector<8x128xf32>
    %145 = vector.broadcast %1 : vector<1x256xf32> to vector<8x256xf32>
    %146 = arith.mulf %136, %145 : vector<8x256xf32>
    %cst_51 = arith.constant dense<0.000000e+00> : vector<8xf32>
    %147 = vector.multi_reduction <add>, %146, %cst_51 [1] : vector<8x256xf32> to vector<8xf32>
    %148 = vector.shape_cast %147 : vector<8xf32> to vector<8x1xf32>
    %149 = vector.broadcast %2 : vector<1x256xf32> to vector<8x256xf32>
    %150 = arith.mulf %136, %149 : vector<8x256xf32>
    %cst_52 = arith.constant dense<0.000000e+00> : vector<8xf32>
    %151 = vector.multi_reduction <add>, %150, %cst_52 [1] : vector<8x256xf32> to vector<8xf32>
    %152 = vector.shape_cast %151 : vector<8xf32> to vector<8x1xf32>
    %153 = arith.mulf %148, %148 : vector<8x1xf32>
    %154 = arith.mulf %152, %152 : vector<8x1xf32>
    %155 = arith.addf %153, %154 : vector<8x1xf32>
    %156 = math.sqrt %155 : vector<8x1xf32>
    %c4 = arith.constant 4 : index
    %c0_53 = arith.constant 0 : index
    %c0_54 = arith.constant 0 : index
    %157 = vector.load %arg4[%c4, %c0_53, %c0_54] : memref<6x8x256xf32, #tpu.memory_space<vmem>>, vector<1x8x128xf32>
    %158 = vector.shape_cast %157 : vector<1x8x128xf32> to vector<8x128xf32>
    %159 = vector.shape_cast %144 : vector<8x128xf32> to vector<1x8x128xf32>
    tpu.vector_store %arg4[%c4, %c0_53, %c0_54], %159 {strides = array<i32>} : memref<6x8x256xf32, #tpu.memory_space<vmem>>, vector<1x8x128xf32>,
    %c0_i32_55 = arith.constant 0 : i32
    %160 = vector.broadcast %c0_i32_55 : i32 to vector<8x128xi32>
    %161 = arith.cmpi eq, %3, %160 : vector<8x128xi32>
    %cst_56 = arith.constant 0.000000e+00 : f32
    %162 = vector.shape_cast %156 : vector<8x1xf32> to vector<8x1xf32>
    %163 = vector.broadcast %162 : vector<8x1xf32> to vector<8x128xf32>
    %164 = vector.broadcast %cst_56 : f32 to vector<8x128xf32>
    %165 = arith.select %161, %163, %164 : vector<8x128xi1>, vector<8x128xf32>
    %c4_57 = arith.constant 4 : index
    %c0_58 = arith.constant 0 : index
    %c128_59 = arith.constant 128 : index
    %166 = vector.load %arg4[%c4_57, %c0_58, %c128_59] : memref<6x8x256xf32, #tpu.memory_space<vmem>>, vector<1x8x128xf32>
    %167 = vector.shape_cast %166 : vector<1x8x128xf32> to vector<8x128xf32>
    %168 = vector.shape_cast %165 : vector<8x128xf32> to vector<1x8x128xf32>
    tpu.vector_store %arg4[%c4_57, %c0_58, %c128_59], %168 {strides = array<i32>} : memref<6x8x256xf32, #tpu.memory_space<vmem>>, vector<1x8x128xf32>,
    %c0_60 = arith.constant 0 : index
    %c640 = arith.constant 640 : index
    %169 = vector.load %arg1[%c0_60, %c640] : memref<8x896xf32, #tpu.memory_space<vmem>>, vector<8x256xf32>
    %170 = arith.truncf %169 : vector<8x256xf32> to vector<8x256xbf16>
    %cst_61 = arith.constant dense<0.000000e+00> : vector<8x256xf32>
    %171 = tpu.matmul %170, %0, %cst_61 {dimension_numbers = #tpu.dot_dimension_numbers<[1], [0], [0], [1], [0, 0, 1, 1], [], []>} : vector<8x256xbf16>, vector<256x256xbf16>, vector<8x256xf32> -> vector<8x256xf32>
    %172 = vector.extract_strided_slice %171 {offsets = [0, 0], sizes = [8, 128], strides = [1, 1]} : vector<8x256xf32> to vector<8x128xf32>
    %173 = vector.extract_strided_slice %171 {offsets = [0, 128], sizes = [8, 128], strides = [1, 1]} : vector<8x256xf32> to vector<8x128xf32>
    %174 = arith.mulf %172, %172 : vector<8x128xf32>
    %175 = arith.mulf %173, %173 : vector<8x128xf32>
    %176 = arith.addf %174, %175 : vector<8x128xf32>
    %177 = math.sqrt %176 : vector<8x128xf32>
    %178 = vector.broadcast %1 : vector<1x256xf32> to vector<8x256xf32>
    %179 = arith.mulf %169, %178 : vector<8x256xf32>
    %cst_62 = arith.constant dense<0.000000e+00> : vector<8xf32>
    %180 = vector.multi_reduction <add>, %179, %cst_62 [1] : vector<8x256xf32> to vector<8xf32>
    %181 = vector.shape_cast %180 : vector<8xf32> to vector<8x1xf32>
    %182 = vector.broadcast %2 : vector<1x256xf32> to vector<8x256xf32>
    %183 = arith.mulf %169, %182 : vector<8x256xf32>
    %cst_63 = arith.constant dense<0.000000e+00> : vector<8xf32>
    %184 = vector.multi_reduction <add>, %183, %cst_63 [1] : vector<8x256xf32> to vector<8xf32>
    %185 = vector.shape_cast %184 : vector<8xf32> to vector<8x1xf32>
    %186 = arith.mulf %181, %181 : vector<8x1xf32>
    %187 = arith.mulf %185, %185 : vector<8x1xf32>
    %188 = arith.addf %186, %187 : vector<8x1xf32>
    %189 = math.sqrt %188 : vector<8x1xf32>
    %c5 = arith.constant 5 : index
    %c0_64 = arith.constant 0 : index
    %c0_65 = arith.constant 0 : index
    %190 = vector.load %arg4[%c5, %c0_64, %c0_65] : memref<6x8x256xf32, #tpu.memory_space<vmem>>, vector<1x8x128xf32>
    %191 = vector.shape_cast %190 : vector<1x8x128xf32> to vector<8x128xf32>
    %192 = vector.shape_cast %177 : vector<8x128xf32> to vector<1x8x128xf32>
    tpu.vector_store %arg4[%c5, %c0_64, %c0_65], %192 {strides = array<i32>} : memref<6x8x256xf32, #tpu.memory_space<vmem>>, vector<1x8x128xf32>,
    %c0_i32_66 = arith.constant 0 : i32
    %193 = vector.broadcast %c0_i32_66 : i32 to vector<8x128xi32>
    %194 = arith.cmpi eq, %3, %193 : vector<8x128xi32>
    %cst_67 = arith.constant 0.000000e+00 : f32
    %195 = vector.shape_cast %189 : vector<8x1xf32> to vector<8x1xf32>
    %196 = vector.broadcast %195 : vector<8x1xf32> to vector<8x128xf32>
    %197 = vector.broadcast %cst_67 : f32 to vector<8x128xf32>
    %198 = arith.select %194, %196, %197 : vector<8x128xi1>, vector<8x128xf32>
    %c5_68 = arith.constant 5 : index
    %c0_69 = arith.constant 0 : index
    %c128_70 = arith.constant 128 : index
    %199 = vector.load %arg4[%c5_68, %c0_69, %c128_70] : memref<6x8x256xf32, #tpu.memory_space<vmem>>, vector<1x8x128xf32>
    %200 = vector.shape_cast %199 : vector<1x8x128xf32> to vector<8x128xf32>
    %201 = vector.shape_cast %198 : vector<8x128xf32> to vector<1x8x128xf32>
    tpu.vector_store %arg4[%c5_68, %c0_69, %c128_70], %201 {strides = array<i32>} : memref<6x8x256xf32, #tpu.memory_space<vmem>>, vector<1x8x128xf32>,
    return
  }
  func.func @transform_0(%arg0: i32) -> (i32, i32) {
    %c0_i32 = arith.constant 0 : i32
    %c0_i32_0 = arith.constant 0 : i32
    return %arg0, %c0_i32 : i32, i32
  }
  func.func @transform_1(%arg0: i32) -> (i32, i32) {
    %c0_i32 = arith.constant 0 : i32
    %c0_i32_0 = arith.constant 0 : i32
    %c0_i32_1 = arith.constant 0 : i32
    return %c0_i32, %c0_i32_0 : i32, i32
  }
  func.func @transform_2(%arg0: i32) -> (i32, i32) {
    %c0_i32 = arith.constant 0 : i32
    %c0_i32_0 = arith.constant 0 : i32
    %c0_i32_1 = arith.constant 0 : i32
    return %c0_i32, %c0_i32_0 : i32, i32
  }
  func.func @transform_3(%arg0: i32) -> (i32, i32, i32) {
    %c0_i32 = arith.constant 0 : i32
    %c0_i32_0 = arith.constant 0 : i32
    %c0_i32_1 = arith.constant 0 : i32
    return %c0_i32, %arg0, %c0_i32_0 : i32, i32, i32
  }
}

</mosaic_0001>

<llo_original>
// kernel: tpu_custom_call.1
$region0: #{tpu_custom_call.1}
  #allocation0 [shape = 'u32[]', space=smem, size = 0x4, offset = 0x4, fixed_abs, tag = 'smem constant byte address 0x4 - core index']
  #allocation1 [shape = 'u32[144,128]{1,0:T(1,128)}', space=vmem, size = 0x12000, scoped, tag = 'internal scratch']
  %s0 = inlined_call_operand.hbm [shape: f32[8,896], index: 0, kind: input, shape index: {}]
  %s1 = inlined_call_operand.hbm [shape: bf16[256,256], index: 1, kind: input, shape index: {}]
  %s2 = inlined_call_operand.vmem [shape: f32[2,256], index: 2, kind: input, shape index: {}]
  %s3 = inlined_call_operand.hbm [shape: f32[6,8,256], index: 3, kind: output, shape index: {}]
  %s4 = sld [smem:[#allocation0]]
  $region30: #{tpu_custom_call.1} parent=0
    _
  %s6 = ssub.s32 1, %s4
  %s7 = scalar_select 0, %s6, %s4
  $region1: #{tpu_custom_call.1} parent=0
    #allocation2 [shape = 'u8[28672]{0}', space=vmem, size = 0x7000, scoped, tag = 'input window, operand 0, single buffered']
    #allocation3 [shape = 's32[1]{0}', space=sflag, size = 0x4, scoped, tag = 'scoped memory for tpu_custom_call.1']
    #allocation4 [shape = 's32[1]{0}', space=sflag, size = 0x4, scoped, tag = 'scoped memory for tpu_custom_call.1']
    #allocation5 [shape = 'u8[131072]{0}', space=vmem, size = 0x20000, scoped, tag = 'input window, operand 1, single buffered']
    #allocation6 [shape = 's32[1]{0}', space=sflag, size = 0x4, scoped, tag = 'scoped memory for tpu_custom_call.1']
    #allocation7 [shape = 'u8[49152]{0}', space=vmem, size = 0xc000, scoped, tag = 'output window, operand 0, single buffered']
    %8 = vsyncpa [#allocation3], 0
    %9 = vsyncpa [#allocation6], 0
    %10 = vsyncpa [#allocation4], 0
    // Predicated region
    $region2: #{tpu_custom_call.1} parent=1 // pred_check
      _
    $region3: #{tpu_custom_call.1} parent=1 // pred_check_branch
      %12 = sbr.rel (0) target = $region5
    $region4: #{tpu_custom_call.1} parent=1 // pred_region
      %s14 = ssub.s32 896, 896
      %15 = vsyncadd [#allocation3], %s14
      %s17 = sshll.u32 [#allocation2], 4
      %s18 = int_to_ptr.vmem [resolvable:$true] %s17
      %20 = dma.hbm_to_vmem [thread:$0]  %s0, 896, %s18, [#allocation3]
    $region5: #{tpu_custom_call.1} parent=1 // pred_fallthru
      _
    // Predicated region
    $region6: #{tpu_custom_call.1} parent=1 // pred_check
      _
    $region7: #{tpu_custom_call.1} parent=1 // pred_check_branch
      %22 = sbr.rel (0) target = $region9
    $region8: #{tpu_custom_call.1} parent=1 // pred_region
      %s24 = ssub.s32 4096, 4096
      %25 = vsyncadd [#allocation6], %s24
      %s26 = sshll.u32 [#allocation5], 4
      %s27 = int_to_ptr.vmem [resolvable:$true] %s26
      %32 = dma.hbm_to_vmem [thread:$0]  %s1, 4096, %s27, [#allocation6], 128, 128, 8
    $region9: #{tpu_custom_call.1} parent=1 // pred_fallthru
      _
    // Predicated region
    $region10: #{tpu_custom_call.1} parent=1 // pred_check
      _
    $region11: #{tpu_custom_call.1} parent=1 // pred_check_branch
      %34 = sbr.rel (0) target = $region13
    $region12: #{tpu_custom_call.1} parent=1 // pred_region
      _
    $region13: #{tpu_custom_call.1} parent=1 // pred_fallthru
      _
    // Predicated region
    $region14: #{tpu_custom_call.1} parent=1 // pred_check
      _
    $region15: #{tpu_custom_call.1} parent=1 // pred_check_branch
      %36 = sbr.rel (0) target = $region17
    $region16: #{tpu_custom_call.1} parent=1 // pred_region
      %37 = dma.done [#allocation3], 896
    $region17: #{tpu_custom_call.1} parent=1 // pred_fallthru
      _
    // Predicated region
    $region18: #{tpu_custom_call.1} parent=1 // pred_check
      _
    $region19: #{tpu_custom_call.1} parent=1 // pred_check_branch
      %39 = sbr.rel (0) target = $region21
    $region20: #{tpu_custom_call.1} parent=1 // pred_region
      %40 = dma.done [#allocation6], 4096
    $region21: #{tpu_custom_call.1} parent=1 // pred_fallthru
      _
    %v41 = vld [vmem:[#allocation5] sm:$0xff]
    %v42 = vld [vmem:[#allocation5 + $0x8] sm:$0xff]
    %v43 = vld [vmem:[#allocation5 + $0x10] sm:$0xff]
    %v44 = vld [vmem:[#allocation5 + $0x18] sm:$0xff]
    %v45 = vld [vmem:[#allocation5 + $0x20] sm:$0xff]
    %v46 = vld [vmem:[#allocation5 + $0x28] sm:$0xff]
    %v47 = vld [vmem:[#allocation5 + $0x30] sm:$0xff]
    %v48 = vld [vmem:[#allocation5 + $0x38] sm:$0xff]
    %v49 = vld [vmem:[#allocation5 + $0x40] sm:$0xff]
    %v50 = vld [vmem:[#allocation5 + $0x48] sm:$0xff]
    %v51 = vld [vmem:[#allocation5 + $0x50] sm:$0xff]
    %v52 = vld [vmem:[#allocation5 + $0x58] sm:$0xff]
    %v53 = vld [vmem:[#allocation5 + $0x60] sm:$0xff]
    %v54 = vld [vmem:[#allocation5 + $0x68] sm:$0xff]
    %v55 = vld [vmem:[#allocation5 + $0x70] sm:$0xff]
    %v56 = vld [vmem:[#allocation5 + $0x78] sm:$0xff]
    %v57 = vld [vmem:[#allocation5 + $0x80] sm:$0xff]
    %v58 = vld [vmem:[#allocation5 + $0x88] sm:$0xff]
    %v59 = vld [vmem:[#allocation5 + $0x90] sm:$0xff]
    %v60 = vld [vmem:[#allocation5 + $0x98] sm:$0xff]
    %v61 = vld [vmem:[#allocation5 + $0xa0] sm:$0xff]
    %v62 = vld [vmem:[#allocation5 + $0xa8] sm:$0xff]
    %v63 = vld [vmem:[#allocation5 + $0xb0] sm:$0xff]
    %v64 = vld [vmem:[#allocation5 + $0xb8] sm:$0xff]
    %v65 = vld [vmem:[#allocation5 + $0xc0] sm:$0xff]
    %v66 = vld [vmem:[#allocation5 + $0xc8] sm:$0xff]
    %v67 = vld [vmem:[#allocation5 + $0xd0] sm:$0xff]
    %v68 = vld [vmem:[#allocation5 + $0xd8] sm:$0xff]
    %v69 = vld [vmem:[#allocation5 + $0xe0] sm:$0xff]
    %v70 = vld [vmem:[#allocation5 + $0xe8] sm:$0xff]
    %v71 = vld [vmem:[#allocation5 + $0xf0] sm:$0xff]
    %v72 = vld [vmem:[#allocation5 + $0xf8] sm:$0xff]
    %v73 = vld [vmem:[%s2] ss:$2 sm:$0x3]
    %s74 = scalar_lea.vmem %s2, 1
    %v75 = vld [vmem:[%s74] ss:$2 sm:$0x3]
    %v76 = vlaneseq
    %v77 = vand.u32 %v76, 127
    %v78 = vld [vmem:[#allocation2] sm:$0xff]
    %v79 = vld [vmem:[#allocation2 + $0x8] sm:$0xff]
    %v80 = vpack.c.bf16 %v78, %v78
    %v81 = vpack.c.bf16 %v79, %v79
    %v114 = vunpack.c.l.b16 %v41
    %v115 = vunpack.c.h.b16 %v41
    %v116 = vunpack.c.l.b16 %v42
    %v117 = vunpack.c.h.b16 %v42
    %v118 = vunpack.c.l.b16 %v43
    %v119 = vunpack.c.h.b16 %v43
    %v120 = vunpack.c.l.b16 %v44
    %v121 = vunpack.c.h.b16 %v44
    %v122 = vunpack.c.l.b16 %v45
    %v123 = vunpack.c.h.b16 %v45
    %v124 = vunpack.c.l.b16 %v46
    %v125 = vunpack.c.h.b16 %v46
    %v126 = vunpack.c.l.b16 %v47
    %v127 = vunpack.c.h.b16 %v47
    %v128 = vunpack.c.l.b16 %v48
    %v129 = vunpack.c.h.b16 %v48
    %v130 = vunpack.c.l.b16 %v49
    %v131 = vunpack.c.h.b16 %v49
    %v132 = vunpack.c.l.b16 %v50
    %v133 = vunpack.c.h.b16 %v50
    %v134 = vunpack.c.l.b16 %v51
    %v135 = vunpack.c.h.b16 %v51
    %v136 = vunpack.c.l.b16 %v52
    %v137 = vunpack.c.h.b16 %v52
    %v138 = vunpack.c.l.b16 %v53
    %v139 = vunpack.c.h.b16 %v53
    %v140 = vunpack.c.l.b16 %v54
    %v141 = vunpack.c.h.b16 %v54
    %v142 = vunpack.c.l.b16 %v55
    %v143 = vunpack.c.h.b16 %v55
    %v144 = vunpack.c.l.b16 %v56
    %v145 = vunpack.c.h.b16 %v56
    %v146 = vunpack.c.l.b16 %v57
    %v147 = vunpack.c.h.b16 %v57
    %v148 = vunpack.c.l.b16 %v58
    %v149 = vunpack.c.h.b16 %v58
    %v150 = vunpack.c.l.b16 %v59
    %v151 = vunpack.c.h.b16 %v59
    %v152 = vunpack.c.l.b16 %v60
    %v153 = vunpack.c.h.b16 %v60
    %v154 = vunpack.c.l.b16 %v61
    %v155 = vunpack.c.h.b16 %v61
    %v156 = vunpack.c.l.b16 %v62
    %v157 = vunpack.c.h.b16 %v62
    %v158 = vunpack.c.l.b16 %v63
    %v159 = vunpack.c.h.b16 %v63
    %v160 = vunpack.c.l.b16 %v64
    %v161 = vunpack.c.h.b16 %v64
    %v162 = vunpack.c.l.b16 %v65
    %v163 = vunpack.c.h.b16 %v65
    %v164 = vunpack.c.l.b16 %v66
    %v165 = vunpack.c.h.b16 %v66
    %v166 = vunpack.c.l.b16 %v67
    %v167 = vunpack.c.h.b16 %v67
    %v168 = vunpack.c.l.b16 %v68
    %v169 = vunpack.c.h.b16 %v68
    %v170 = vunpack.c.l.b16 %v69
    %v171 = vunpack.c.h.b16 %v69
    %v172 = vunpack.c.l.b16 %v70
    %v173 = vunpack.c.h.b16 %v70
    %v174 = vunpack.c.l.b16 %v71
    %v175 = vunpack.c.h.b16 %v71
    %v176 = vunpack.c.l.b16 %v72
    %v177 = vunpack.c.h.b16 %v72
    %v178 = vpack.c.b16 %v116, %v114
    %v179 = vpack.c.b16 %v117, %v115
    %v180 = vpack.c.b16 %v120, %v118
    %v181 = vpack.c.b16 %v121, %v119
    %v182 = vpack.c.b16 %v124, %v122
    %v183 = vpack.c.b16 %v125, %v123
    %v184 = vpack.c.b16 %v128, %v126
    %v185 = vpack.c.b16 %v129, %v127
    %v186 = vpack.c.b16 %v132, %v130
    %v187 = vpack.c.b16 %v133, %v131
    %v188 = vpack.c.b16 %v136, %v134
    %v189 = vpack.c.b16 %v137, %v135
    %v190 = vpack.c.b16 %v140, %v138
    %v191 = vpack.c.b16 %v141, %v139
    %v192 = vpack.c.b16 %v144, %v142
    %v193 = vpack.c.b16 %v145, %v143
    %v194 = vpack.c.b16 %v148, %v146
    %v195 = vpack.c.b16 %v149, %v147
    %v196 = vpack.c.b16 %v152, %v150
    %v197 = vpack.c.b16 %v153, %v151
    %v198 = vpack.c.b16 %v156, %v154
    %v199 = vpack.c.b16 %v157, %v155
    %v200 = vpack.c.b16 %v160, %v158
    %v201 = vpack.c.b16 %v161, %v159
    %v202 = vpack.c.b16 %v164, %v162
    %v203 = vpack.c.b16 %v165, %v163
    %v204 = vpack.c.b16 %v168, %v166
    %v205 = vpack.c.b16 %v169, %v167
    %v206 = vpack.c.b16 %v172, %v170
    %v207 = vpack.c.b16 %v173, %v171
    %v208 = vpack.c.b16 %v176, %v174
    %v209 = vpack.c.b16 %v177, %v175
    %242 = vmatprep.subr.bf16.mxu0 %v179
    %243 = vmatpush1.bf16.msra.mxu0 %v178
    %244 = vmatprep.subr.bf16.mxu0 %v181
    %245 = vmatpush1.bf16.msra.mxu0 %v180
    %246 = vmatprep.subr.bf16.mxu0 %v183
    %247 = vmatpush1.bf16.msra.mxu0 %v182
    %248 = vmatprep.subr.bf16.mxu0 %v185
    %249 = vmatpush1.bf16.msra.mxu0 %v184
    %250 = vmatprep.subr.bf16.mxu0 %v187
    %251 = vmatpush1.bf16.msra.mxu0 %v186
    %252 = vmatprep.subr.bf16.mxu0 %v189
    %253 = vmatpush1.bf16.msra.mxu0 %v188
    %254 = vmatprep.subr.bf16.mxu0 %v191
    %255 = vmatpush1.bf16.msra.mxu0 %v190
    %256 = vmatprep.subr.bf16.mxu0 %v193
    %257 = vmatpush1.bf16.msra.mxu0 %v192
    %258 = vmatprep.subr.bf16.mxu0 %v195
    %259 = vmatpush1.bf16.msra.mxu0 %v194
    %260 = vmatprep.subr.bf16.mxu0 %v197
    %261 = vmatpush1.bf16.msra.mxu0 %v196
    %262 = vmatprep.subr.bf16.mxu0 %v199
    %263 = vmatpush1.bf16.msra.mxu0 %v198
    %264 = vmatprep.subr.bf16.mxu0 %v201
    %265 = vmatpush1.bf16.msra.mxu0 %v200
    %266 = vmatprep.subr.bf16.mxu0 %v203
    %267 = vmatpush1.bf16.msra.mxu0 %v202
    %268 = vmatprep.subr.bf16.mxu0 %v205
    %269 = vmatpush1.bf16.msra.mxu0 %v204
    %270 = vmatprep.subr.bf16.mxu0 %v207
    %271 = vmatpush1.bf16.msra.mxu0 %v206
    %272 = vmatprep.subr.bf16.mxu0 %v209
    %273 = vmatpush1.bf16.msra.mxu0 %v208
    %274 = vmatprep.mubr.bf16.mxu0 %v81
    %275 = vmatmul.mubr.bf16.gmra.mrb[0].mxu0 %v80
    %v276 = vpop.f32.mrb[0].mxu0
    %v277 = vadd.f32 0.0, %v276
    %v278 = vpop.f32.mrb[0].mxu0
    %v279 = vadd.f32 0.0, %v278
    %v280 = vpop.f32.mrb[0].mxu0
    %v281 = vpop.f32.mrb[0].mxu0
    %282 = vdwg.mxu0
    %v283 = vmul.f32 %v277, %v277
    %v284 = vmul.f32 %v279, %v279
    %v285 = vadd.f32 %v283, %v284
    %v286 = vrsqrt.pop %v285
    %v287 = vmul.f32 %v285, %v286
    %vm288 = vcmp.eq.f32.partialorder %v285, inf
    %v289 = vsel %vm288, %v285, %v287
    %vm290 = vcmp.eq.f32.partialorder %v285, 0.0
    %v291 = vand.u32 %v285, 2147483648
    %v292 = vsel %vm290, %v291, %v289
    %v294 = vlaneseq
    %v295 = vshrl.u32 %v294, 7
    %v296 = vsub.s32 0, %v295
    %v297 = vrot.slane %v73, %v296
    %v298 = vlaneseq
    %v299 = vshrl.u32 %v298, 7
    %v300 = vsub.s32 1, %v299
    %v301 = vrot.slane %v73, %v300
    %v304 = vmul.f32 %v78, %v297
    %v305 = vmul.f32 %v79, %v301
    %v306 = vadd.f32 %v304, %v305
    %307 = vadd.xlane.f32.xlu0 %v306
    %v308 = vpop.xlane.xlu0 %307
    %v310 = vlaneseq
    %v311 = vshrl.u32 %v310, 7
    %v312 = vsub.s32 0, %v311
    %v313 = vrot.slane %v75, %v312
    %v314 = vlaneseq
    %v315 = vshrl.u32 %v314, 7
    %v316 = vsub.s32 1, %v315
    %v317 = vrot.slane %v75, %v316
    %v320 = vmul.f32 %v78, %v313
    %v321 = vmul.f32 %v79, %v317
    %v322 = vadd.f32 %v320, %v321
    %323 = vadd.xlane.f32.xlu0 %v322
    %v324 = vpop.xlane.xlu0 %323
    %v325 = vmul.f32 %v308, %v308
    %v326 = vmul.f32 %v324, %v324
    %v327 = vadd.f32 %v325, %v326
    %v328 = vrsqrt.pop %v327
    %v329 = vmul.f32 %v327, %v328
    %vm330 = vcmp.eq.f32.partialorder %v327, inf
    %v331 = vsel %vm330, %v327, %v329
    %vm332 = vcmp.eq.f32.partialorder %v327, 0.0
    %v333 = vand.u32 %v327, 2147483648
    %v334 = vsel %vm332, %v333, %v331
    %335 = vst [vmem:[#allocation7] sm:$0xff] %v292
    %vm336 = vcmp.eq.s32.totalorder %v77, 0
    %v337 = vsel %vm336, %v334, 0.0
    %338 = vst [vmem:[#allocation7 + $0x8] sm:$0xff] %v337
    %v339 = vld [vmem:[#allocation2 + $0x8] sm:$0xff]
    %v340 = vld [vmem:[#allocation2 + $0x10] sm:$0xff]
    %v341 = vpack.c.bf16 %v339, %v339
    %v342 = vpack.c.bf16 %v340, %v340
    %343 = vmatprep.subr.bf16.mxu0 %v179
    %344 = vmatpush1.bf16.msra.mxu0 %v178
    %345 = vmatprep.subr.bf16.mxu0 %v181
    %346 = vmatpush1.bf16.msra.mxu0 %v180
    %347 = vmatprep.subr.bf16.mxu0 %v183
    %348 = vmatpush1.bf16.msra.mxu0 %v182
    %349 = vmatprep.subr.bf16.mxu0 %v185
    %350 = vmatpush1.bf16.msra.mxu0 %v184
    %351 = vmatprep.subr.bf16.mxu0 %v187
    %352 = vmatpush1.bf16.msra.mxu0 %v186
    %353 = vmatprep.subr.bf16.mxu0 %v189
    %354 = vmatpush1.bf16.msra.mxu0 %v188
    %355 = vmatprep.subr.bf16.mxu0 %v191
    %356 = vmatpush1.bf16.msra.mxu0 %v190
    %357 = vmatprep.subr.bf16.mxu0 %v193
    %358 = vmatpush1.bf16.msra.mxu0 %v192
    %359 = vmatprep.subr.bf16.mxu0 %v195
    %360 = vmatpush1.bf16.msra.mxu0 %v194
    %361 = vmatprep.subr.bf16.mxu0 %v197
    %362 = vmatpush1.bf16.msra.mxu0 %v196
    %363 = vmatprep.subr.bf16.mxu0 %v199
    %364 = vmatpush1.bf16.msra.mxu0 %v198
    %365 = vmatprep.subr.bf16.mxu0 %v201
    %366 = vmatpush1.bf16.msra.mxu0 %v200
    %367 = vmatprep.subr.bf16.mxu0 %v203
    %368 = vmatpush1.bf16.msra.mxu0 %v202
    %369 = vmatprep.subr.bf16.mxu0 %v205
    %370 = vmatpush1.bf16.msra.mxu0 %v204
    %371 = vmatprep.subr.bf16.mxu0 %v207
    %372 = vmatpush1.bf16.msra.mxu0 %v206
    %373 = vmatprep.subr.bf16.mxu0 %v209
    %374 = vmatpush1.bf16.msra.mxu0 %v208
    %375 = vmatprep.mubr.bf16.mxu0 %v342
    %376 = vmatmul.mubr.bf16.gmra.mrb[0].mxu0 %v341
    %v377 = vpop.f32.mrb[0].mxu0
    %v378 = vadd.f32 0.0, %v377
    %v379 = vpop.f32.mrb[0].mxu0
    %v380 = vadd.f32 0.0, %v379
    %v381 = vpop.f32.mrb[0].mxu0
    %v382 = vpop.f32.mrb[0].mxu0
    %383 = vdwg.mxu0
    %v384 = vmul.f32 %v378, %v378
    %v385 = vmul.f32 %v380, %v380
    %v386 = vadd.f32 %v384, %v385
    %v387 = vrsqrt.pop %v386
    %v388 = vmul.f32 %v386, %v387
    %vm389 = vcmp.eq.f32.partialorder %v386, inf
    %v390 = vsel %vm389, %v386, %v388
    %vm391 = vcmp.eq.f32.partialorder %v386, 0.0
    %v392 = vand.u32 %v386, 2147483648
    %v393 = vsel %vm391, %v392, %v390
    %v394 = vmul.f32 %v339, %v297
    %v395 = vmul.f32 %v340, %v301
    %v396 = vadd.f32 %v394, %v395
    %397 = vadd.xlane.f32.xlu0 %v396
    %v398 = vpop.xlane.xlu0 %397
    %v399 = vmul.f32 %v339, %v313
    %v400 = vmul.f32 %v340, %v317
    %v401 = vadd.f32 %v399, %v400
    %402 = vadd.xlane.f32.xlu0 %v401
    %v403 = vpop.xlane.xlu0 %402
    %v404 = vmul.f32 %v398, %v398
    %v405 = vmul.f32 %v403, %v403
    %v406 = vadd.f32 %v404, %v405
    %v407 = vrsqrt.pop %v406
    %v408 = vmul.f32 %v406, %v407
    %vm409 = vcmp.eq.f32.partialorder %v406, inf
    %v410 = vsel %vm409, %v406, %v408
    %vm411 = vcmp.eq.f32.partialorder %v406, 0.0
    %v412 = vand.u32 %v406, 2147483648
    %v413 = vsel %vm411, %v412, %v410
    %s414 = scalar_lea.vmem [#allocation7], 16
    %415 = vst [vmem:[%s414] sm:$0xff] %v393
    %v416 = vsel %vm336, %v413, 0.0
    %417 = vst [vmem:[%s414 + $0x8] sm:$0xff] %v416
    %v418 = vld [vmem:[#allocation2 + $0x10] sm:$0xff]
    %v419 = vld [vmem:[#allocation2 + $0x18] sm:$0xff]
    %v420 = vpack.c.bf16 %v418, %v418
    %v421 = vpack.c.bf16 %v419, %v419
    %422 = vmatprep.subr.bf16.mxu0 %v179
    %423 = vmatpush1.bf16.msra.mxu0 %v178
    %424 = vmatprep.subr.bf16.mxu0 %v181
    %425 = vmatpush1.bf16.msra.mxu0 %v180
    %426 = vmatprep.subr.bf16.mxu0 %v183
    %427 = vmatpush1.bf16.msra.mxu0 %v182
    %428 = vmatprep.subr.bf16.mxu0 %v185
    %429 = vmatpush1.bf16.msra.mxu0 %v184
    %430 = vmatprep.subr.bf16.mxu0 %v187
    %431 = vmatpush1.bf16.msra.mxu0 %v186
    %432 = vmatprep.subr.bf16.mxu0 %v189
    %433 = vmatpush1.bf16.msra.mxu0 %v188
    %434 = vmatprep.subr.bf16.mxu0 %v191
    %435 = vmatpush1.bf16.msra.mxu0 %v190
    %436 = vmatprep.subr.bf16.mxu0 %v193
    %437 = vmatpush1.bf16.msra.mxu0 %v192
    %438 = vmatprep.subr.bf16.mxu0 %v195
    %439 = vmatpush1.bf16.msra.mxu0 %v194
    %440 = vmatprep.subr.bf16.mxu0 %v197
    %441 = vmatpush1.bf16.msra.mxu0 %v196
    %442 = vmatprep.subr.bf16.mxu0 %v199
    %443 = vmatpush1.bf16.msra.mxu0 %v198
    %444 = vmatprep.subr.bf16.mxu0 %v201
    %445 = vmatpush1.bf16.msra.mxu0 %v200
    %446 = vmatprep.subr.bf16.mxu0 %v203
    %447 = vmatpush1.bf16.msra.mxu0 %v202
    %448 = vmatprep.subr.bf16.mxu0 %v205
    %449 = vmatpush1.bf16.msra.mxu0 %v204
    %450 = vmatprep.subr.bf16.mxu0 %v207
    %451 = vmatpush1.bf16.msra.mxu0 %v206
    %452 = vmatprep.subr.bf16.mxu0 %v209
    %453 = vmatpush1.bf16.msra.mxu0 %v208
    %454 = vmatprep.mubr.bf16.mxu0 %v421
    %455 = vmatmul.mubr.bf16.gmra.mrb[0].mxu0 %v420
    %v456 = vpop.f32.mrb[0].mxu0
    %v457 = vadd.f32 0.0, %v456
    %v458 = vpop.f32.mrb[0].mxu0
    %v459 = vadd.f32 0.0, %v458
    %v460 = vpop.f32.mrb[0].mxu0
    %v461 = vpop.f32.mrb[0].mxu0
    %462 = vdwg.mxu0
    %v463 = vmul.f32 %v457, %v457
    %v464 = vmul.f32 %v459, %v459
    %v465 = vadd.f32 %v463, %v464
    %v466 = vrsqrt.pop %v465
    %v467 = vmul.f32 %v465, %v466
    %vm468 = vcmp.eq.f32.partialorder %v465, inf
    %v469 = vsel %vm468, %v465, %v467
    %vm470 = vcmp.eq.f32.partialorder %v465, 0.0
    %v471 = vand.u32 %v465, 2147483648
    %v472 = vsel %vm470, %v471, %v469
    %v473 = vmul.f32 %v418, %v297
    %v474 = vmul.f32 %v419, %v301
    %v475 = vadd.f32 %v473, %v474
    %476 = vadd.xlane.f32.xlu0 %v475
    %v477 = vpop.xlane.xlu0 %476
    %v478 = vmul.f32 %v418, %v313
    %v479 = vmul.f32 %v419, %v317
    %v480 = vadd.f32 %v478, %v479
    %481 = vadd.xlane.f32.xlu0 %v480
    %v482 = vpop.xlane.xlu0 %481
    %v483 = vmul.f32 %v477, %v477
    %v484 = vmul.f32 %v482, %v482
    %v485 = vadd.f32 %v483, %v484
    %v486 = vrsqrt.pop %v485
    %v487 = vmul.f32 %v485, %v486
    %vm488 = vcmp.eq.f32.partialorder %v485, inf
    %v489 = vsel %vm488, %v485, %v487
    %vm490 = vcmp.eq.f32.partialorder %v485, 0.0
    %v491 = vand.u32 %v485, 2147483648
    %v492 = vsel %vm490, %v491, %v489
    %s493 = scalar_lea.vmem [#allocation7], 32
    %494 = vst [vmem:[%s493] sm:$0xff] %v472
    %v495 = vsel %vm336, %v492, 0.0
    %496 = vst [vmem:[%s493 + $0x8] sm:$0xff] %v495
    %v497 = vld [vmem:[#allocation2 + $0x18] sm:$0xff]
    %v498 = vld [vmem:[#allocation2 + $0x20] sm:$0xff]
    %v499 = vpack.c.bf16 %v497, %v497
    %v500 = vpack.c.bf16 %v498, %v498
    %501 = vmatprep.subr.bf16.mxu0 %v179
    %502 = vmatpush1.bf16.msra.mxu0 %v178
    %503 = vmatprep.subr.bf16.mxu0 %v181
    %504 = vmatpush1.bf16.msra.mxu0 %v180
    %505 = vmatprep.subr.bf16.mxu0 %v183
    %506 = vmatpush1.bf16.msra.mxu0 %v182
    %507 = vmatprep.subr.bf16.mxu0 %v185
    %508 = vmatpush1.bf16.msra.mxu0 %v184
    %509 = vmatprep.subr.bf16.mxu0 %v187
    %510 = vmatpush1.bf16.msra.mxu0 %v186
    %511 = vmatprep.subr.bf16.mxu0 %v189
    %512 = vmatpush1.bf16.msra.mxu0 %v188
    %513 = vmatprep.subr.bf16.mxu0 %v191
    %514 = vmatpush1.bf16.msra.mxu0 %v190
    %515 = vmatprep.subr.bf16.mxu0 %v193
    %516 = vmatpush1.bf16.msra.mxu0 %v192
    %517 = vmatprep.subr.bf16.mxu0 %v195
    %518 = vmatpush1.bf16.msra.mxu0 %v194
    %519 = vmatprep.subr.bf16.mxu0 %v197
    %520 = vmatpush1.bf16.msra.mxu0 %v196
    %521 = vmatprep.subr.bf16.mxu0 %v199
    %522 = vmatpush1.bf16.msra.mxu0 %v198
    %523 = vmatprep.subr.bf16.mxu0 %v201
    %524 = vmatpush1.bf16.msra.mxu0 %v200
    %525 = vmatprep.subr.bf16.mxu0 %v203
    %526 = vmatpush1.bf16.msra.mxu0 %v202
    %527 = vmatprep.subr.bf16.mxu0 %v205
    %528 = vmatpush1.bf16.msra.mxu0 %v204
    %529 = vmatprep.subr.bf16.mxu0 %v207
    %530 = vmatpush1.bf16.msra.mxu0 %v206
    %531 = vmatprep.subr.bf16.mxu0 %v209
    %532 = vmatpush1.bf16.msra.mxu0 %v208
    %533 = vmatprep.mubr.bf16.mxu0 %v500
    %534 = vmatmul.mubr.bf16.gmra.mrb[0].mxu0 %v499
    %v535 = vpop.f32.mrb[0].mxu0
    %v536 = vadd.f32 0.0, %v535
    %v537 = vpop.f32.mrb[0].mxu0
    %v538 = vadd.f32 0.0, %v537
    %v539 = vpop.f32.mrb[0].mxu0
    %v540 = vpop.f32.mrb[0].mxu0
    %541 = vdwg.mxu0
    %v542 = vmul.f32 %v536, %v536
    %v543 = vmul.f32 %v538, %v538
    %v544 = vadd.f32 %v542, %v543
    %v545 = vrsqrt.pop %v544
    %v546 = vmul.f32 %v544, %v545
    %vm547 = vcmp.eq.f32.partialorder %v544, inf
    %v548 = vsel %vm547, %v544, %v546
    %vm549 = vcmp.eq.f32.partialorder %v544, 0.0
    %v550 = vand.u32 %v544, 2147483648
    %v551 = vsel %vm549, %v550, %v548
    %v552 = vmul.f32 %v497, %v297
    %v553 = vmul.f32 %v498, %v301
    %v554 = vadd.f32 %v552, %v553
    %555 = vadd.xlane.f32.xlu0 %v554
    %v556 = vpop.xlane.xlu0 %555
    %v557 = vmul.f32 %v497, %v313
    %v558 = vmul.f32 %v498, %v317
    %v559 = vadd.f32 %v557, %v558
    %560 = vadd.xlane.f32.xlu0 %v559
    %v561 = vpop.xlane.xlu0 %560
    %v562 = vmul.f32 %v556, %v556
    %v563 = vmul.f32 %v561, %v561
    %v564 = vadd.f32 %v562, %v563
    %v565 = vrsqrt.pop %v564
    %v566 = vmul.f32 %v564, %v565
    %vm567 = vcmp.eq.f32.partialorder %v564, inf
    %v568 = vsel %vm567, %v564, %v566
    %vm569 = vcmp.eq.f32.partialorder %v564, 0.0
    %v570 = vand.u32 %v564, 2147483648
    %v571 = vsel %vm569, %v570, %v568
    %s572 = scalar_lea.vmem [#allocation7], 48
    %573 = vst [vmem:[%s572] sm:$0xff] %v551
    %v574 = vsel %vm336, %v571, 0.0
    %575 = vst [vmem:[%s572 + $0x8] sm:$0xff] %v574
    %v576 = vld [vmem:[#allocation2 + $0x20] sm:$0xff]
    %v577 = vld [vmem:[#allocation2 + $0x28] sm:$0xff]
    %v578 = vpack.c.bf16 %v576, %v576
    %v579 = vpack.c.bf16 %v577, %v577
    %580 = vmatprep.subr.bf16.mxu0 %v179
    %581 = vmatpush1.bf16.msra.mxu0 %v178
    %582 = vmatprep.subr.bf16.mxu0 %v181
    %583 = vmatpush1.bf16.msra.mxu0 %v180
    %584 = vmatprep.subr.bf16.mxu0 %v183
    %585 = vmatpush1.bf16.msra.mxu0 %v182
    %586 = vmatprep.subr.bf16.mxu0 %v185
    %587 = vmatpush1.bf16.msra.mxu0 %v184
    %588 = vmatprep.subr.bf16.mxu0 %v187
    %589 = vmatpush1.bf16.msra.mxu0 %v186
    %590 = vmatprep.subr.bf16.mxu0 %v189
    %591 = vmatpush1.bf16.msra.mxu0 %v188
    %592 = vmatprep.subr.bf16.mxu0 %v191
    %593 = vmatpush1.bf16.msra.mxu0 %v190
    %594 = vmatprep.subr.bf16.mxu0 %v193
    %595 = vmatpush1.bf16.msra.mxu0 %v192
    %596 = vmatprep.subr.bf16.mxu0 %v195
    %597 = vmatpush1.bf16.msra.mxu0 %v194
    %598 = vmatprep.subr.bf16.mxu0 %v197
    %599 = vmatpush1.bf16.msra.mxu0 %v196
    %600 = vmatprep.subr.bf16.mxu0 %v199
    %601 = vmatpush1.bf16.msra.mxu0 %v198
    %602 = vmatprep.subr.bf16.mxu0 %v201
    %603 = vmatpush1.bf16.msra.mxu0 %v200
    %604 = vmatprep.subr.bf16.mxu0 %v203
    %605 = vmatpush1.bf16.msra.mxu0 %v202
    %606 = vmatprep.subr.bf16.mxu0 %v205
    %607 = vmatpush1.bf16.msra.mxu0 %v204
    %608 = vmatprep.subr.bf16.mxu0 %v207
    %609 = vmatpush1.bf16.msra.mxu0 %v206
    %610 = vmatprep.subr.bf16.mxu0 %v209
    %611 = vmatpush1.bf16.msra.mxu0 %v208
    %612 = vmatprep.mubr.bf16.mxu0 %v579
    %613 = vmatmul.mubr.bf16.gmra.mrb[0].mxu0 %v578
    %v614 = vpop.f32.mrb[0].mxu0
    %v615 = vadd.f32 0.0, %v614
    %v616 = vpop.f32.mrb[0].mxu0
    %v617 = vadd.f32 0.0, %v616
    %v618 = vpop.f32.mrb[0].mxu0
    %v619 = vpop.f32.mrb[0].mxu0
    %620 = vdwg.mxu0
    %v621 = vmul.f32 %v615, %v615
    %v622 = vmul.f32 %v617, %v617
    %v623 = vadd.f32 %v621, %v622
    %v624 = vrsqrt.pop %v623
    %v625 = vmul.f32 %v623, %v624
    %vm626 = vcmp.eq.f32.partialorder %v623, inf
    %v627 = vsel %vm626, %v623, %v625
    %vm628 = vcmp.eq.f32.partialorder %v623, 0.0
    %v629 = vand.u32 %v623, 2147483648
    %v630 = vsel %vm628, %v629, %v627
    %v631 = vmul.f32 %v576, %v297
    %v632 = vmul.f32 %v577, %v301
    %v633 = vadd.f32 %v631, %v632
    %634 = vadd.xlane.f32.xlu0 %v633
    %v635 = vpop.xlane.xlu0 %634
    %v636 = vmul.f32 %v576, %v313
    %v637 = vmul.f32 %v577, %v317
    %v638 = vadd.f32 %v636, %v637
    %639 = vadd.xlane.f32.xlu0 %v638
    %v640 = vpop.xlane.xlu0 %639
    %v641 = vmul.f32 %v635, %v635
    %v642 = vmul.f32 %v640, %v640
    %v643 = vadd.f32 %v641, %v642
    %v644 = vrsqrt.pop %v643
    %v645 = vmul.f32 %v643, %v644
    %vm646 = vcmp.eq.f32.partialorder %v643, inf
    %v647 = vsel %vm646, %v643, %v645
    %vm648 = vcmp.eq.f32.partialorder %v643, 0.0
    %v649 = vand.u32 %v643, 2147483648
    %v650 = vsel %vm648, %v649, %v647
    %s651 = scalar_lea.vmem [#allocation7], 64
    %652 = vst [vmem:[%s651] sm:$0xff] %v630
    %v653 = vsel %vm336, %v650, 0.0
    %654 = vst [vmem:[%s651 + $0x8] sm:$0xff] %v653
    %v655 = vld [vmem:[#allocation2 + $0x28] sm:$0xff]
    %v656 = vld [vmem:[#allocation2 + $0x30] sm:$0xff]
    %v657 = vpack.c.bf16 %v655, %v655
    %v658 = vpack.c.bf16 %v656, %v656
    %659 = vmatprep.subr.bf16.mxu0 %v179
    %660 = vmatpush1.bf16.msra.mxu0 %v178
    %661 = vmatprep.subr.bf16.mxu0 %v181
    %662 = vmatpush1.bf16.msra.mxu0 %v180
    %663 = vmatprep.subr.bf16.mxu0 %v183
    %664 = vmatpush1.bf16.msra.mxu0 %v182
    %665 = vmatprep.subr.bf16.mxu0 %v185
    %666 = vmatpush1.bf16.msra.mxu0 %v184
    %667 = vmatprep.subr.bf16.mxu0 %v187
    %668 = vmatpush1.bf16.msra.mxu0 %v186
    %669 = vmatprep.subr.bf16.mxu0 %v189
    %670 = vmatpush1.bf16.msra.mxu0 %v188
    %671 = vmatprep.subr.bf16.mxu0 %v191
    %672 = vmatpush1.bf16.msra.mxu0 %v190
    %673 = vmatprep.subr.bf16.mxu0 %v193
    %674 = vmatpush1.bf16.msra.mxu0 %v192
    %675 = vmatprep.subr.bf16.mxu0 %v195
    %676 = vmatpush1.bf16.msra.mxu0 %v194
    %677 = vmatprep.subr.bf16.mxu0 %v197
    %678 = vmatpush1.bf16.msra.mxu0 %v196
    %679 = vmatprep.subr.bf16.mxu0 %v199
    %680 = vmatpush1.bf16.msra.mxu0 %v198
    %681 = vmatprep.subr.bf16.mxu0 %v201
    %682 = vmatpush1.bf16.msra.mxu0 %v200
    %683 = vmatprep.subr.bf16.mxu0 %v203
    %684 = vmatpush1.bf16.msra.mxu0 %v202
    %685 = vmatprep.subr.bf16.mxu0 %v205
    %686 = vmatpush1.bf16.msra.mxu0 %v204
    %687 = vmatprep.subr.bf16.mxu0 %v207
    %688 = vmatpush1.bf16.msra.mxu0 %v206
    %689 = vmatprep.subr.bf16.mxu0 %v209
    %690 = vmatpush1.bf16.msra.mxu0 %v208
    %691 = vmatprep.mubr.bf16.mxu0 %v658
    %692 = vmatmul.mubr.bf16.gmra.mrb[0].mxu0 %v657
    %v693 = vpop.f32.mrb[0].mxu0
    %v694 = vadd.f32 0.0, %v693
    %v695 = vpop.f32.mrb[0].mxu0
    %v696 = vadd.f32 0.0, %v695
    %v697 = vpop.f32.mrb[0].mxu0
    %v698 = vpop.f32.mrb[0].mxu0
    %699 = vdwg.mxu0
    %v700 = vmul.f32 %v694, %v694
    %v701 = vmul.f32 %v696, %v696
    %v702 = vadd.f32 %v700, %v701
    %v703 = vrsqrt.pop %v702
    %v704 = vmul.f32 %v702, %v703
    %vm705 = vcmp.eq.f32.partialorder %v702, inf
    %v706 = vsel %vm705, %v702, %v704
    %vm707 = vcmp.eq.f32.partialorder %v702, 0.0
    %v708 = vand.u32 %v702, 2147483648
    %v709 = vsel %vm707, %v708, %v706
    %v710 = vmul.f32 %v655, %v297
    %v711 = vmul.f32 %v656, %v301
    %v712 = vadd.f32 %v710, %v711
    %713 = vadd.xlane.f32.xlu0 %v712
    %v714 = vpop.xlane.xlu0 %713
    %v715 = vmul.f32 %v655, %v313
    %v716 = vmul.f32 %v656, %v317
    %v717 = vadd.f32 %v715, %v716
    %718 = vadd.xlane.f32.xlu0 %v717
    %v719 = vpop.xlane.xlu0 %718
    %v720 = vmul.f32 %v714, %v714
    %v721 = vmul.f32 %v719, %v719
    %v722 = vadd.f32 %v720, %v721
    %v723 = vrsqrt.pop %v722
    %v724 = vmul.f32 %v722, %v723
    %vm725 = vcmp.eq.f32.partialorder %v722, inf
    %v726 = vsel %vm725, %v722, %v724
    %vm727 = vcmp.eq.f32.partialorder %v722, 0.0
    %v728 = vand.u32 %v722, 2147483648
    %v729 = vsel %vm727, %v728, %v726
    %s730 = scalar_lea.vmem [#allocation7], 80
    %731 = vst [vmem:[%s730] sm:$0xff] %v709
    %v732 = vsel %vm336, %v729, 0.0
    %733 = vst [vmem:[%s730 + $0x8] sm:$0xff] %v732
    // Predicated region
    $region22: #{tpu_custom_call.1} parent=1 // pred_check
      _
    $region23: #{tpu_custom_call.1} parent=1 // pred_check_branch
      %735 = sbr.rel (0) target = $region25
    $region24: #{tpu_custom_call.1} parent=1 // pred_region
      %s737 = ssub.s32 1536, 1536
      %738 = vsyncadd [#allocation4], %s737
      %s739 = sshll.u32 [#allocation7], 4
      %s740 = int_to_ptr.vmem [resolvable:$true] %s739
      %745 = dma.vmem_to_hbm [thread:$0]  %s740, 1536, %s3, [#allocation4], 256, 256, 16
    $region25: #{tpu_custom_call.1} parent=1 // pred_fallthru
      _
    // Predicated region
    $region26: #{tpu_custom_call.1} parent=1 // pred_check
      _
    $region27: #{tpu_custom_call.1} parent=1 // pred_check_branch
      %747 = sbr.rel (0) target = $region29
    $region28: #{tpu_custom_call.1} parent=1 // pred_region
      %748 = dma.done [#allocation4], 1536
    $region29: #{tpu_custom_call.1} parent=1 // pred_fallthru
      _
    %749 = vsyncpa [#allocation3], 1
    %750 = vsyncpa [#allocation6], 1
    %751 = vsyncpa [#allocation4], 1

</llo_original>
